<compile_context>
chip_gen: v7x
topology: tpu7x:2x2x1
jax: 0.10.0
libtpu: 0.0.40
codegen_flags: <defaults>
</compile_context>

<pallas_src>
import jax
import jax.numpy as jnp
from jax.experimental import pallas as pl
from jax.experimental.pallas import tpu as pltpu


def policy_kernel(x_ref, w1_ref, b1_ref, w2_ref, b2_ref, out_ref):
    # x arrives f32; cast to bf16 in-kernel so the MXU sees bf16 operands
    # (f32 accumulation via preferred_element_type).
    x_bf = x_ref[...].astype(jnp.bfloat16)

    # hidden = tanh(x @ W1 + b1)   — bias add + tanh in bf16 (feeds the 2nd dot).
    h = jnp.dot(x_bf, w1_ref[...], preferred_element_type=jnp.float32)
    h = jnp.tanh(h.astype(jnp.bfloat16) + b1_ref[...])

    # logits = h @ W2_pad + b2_pad  over the lane-dense (padded to 128) action axis.
    # Padded b2 entries are -1e30 => exp underflows to exactly 0, softmax over the
    # real columns is unchanged.
    logits = jnp.dot(h, w2_ref[...], preferred_element_type=jnp.float32) + b2_ref[...]

    # Numerically stable softmax, f32 throughout, EXACT normalization so every
    # row sums to 1 within f32 rounding.
    m = jnp.max(logits, axis=-1, keepdims=True)
    e = jnp.exp(logits - m)
    denom = jnp.sum(e, axis=-1, keepdims=True)
    out_ref[...] = (e / denom).astype(out_ref.dtype)


def policy_network_forward(x, w1, b1, w2, b2, *, tile_b=256):
    """Fused PolicyNetwork forward.

    x:  (B, obs) float32
    w1: (obs, 128), b1: (128,) or (1, 128)
    w2: (128, A),  b2: (A,)  or (1, A)
    Returns (B, A) float32 action probabilities (rows sum to 1).
    """
    B, obs = x.shape
    hidden = w1.shape[1]
    actions = w2.shape[1]

    # Lane-dense action axis: pad A up to a multiple of 128.
    a_pad = pl.cdiv(actions, 128) * 128

    # Weights are tiny: cast / pad once per call. (For a trained policy, store
    # w1/w2 in bf16 and b2 pre-padded outside the hot path.)
    w1b = w1.astype(jnp.bfloat16)
    b1b = jnp.reshape(b1, (1, hidden)).astype(jnp.bfloat16)
    w2b = jnp.zeros((hidden, a_pad), jnp.bfloat16).at[:, :actions].set(
        w2.astype(jnp.bfloat16))
    b2f = jnp.full((1, a_pad), -1e30, jnp.float32).at[0, :actions].set(
        jnp.reshape(b2, (-1,)).astype(jnp.float32))

    # Batch tiling: whole-batch tile (rounded to sublane multiple of 8) when B is
    # small, otherwise tile_b tiles. Keep n_tiles even on v7x for a balanced
    # 2-TC split of the "parallel" grid axis.
    x = x.astype(jnp.float32)
    tb = min(tile_b, max(8, pl.cdiv(B, 8) * 8))
    n_tiles = pl.cdiv(B, tb)
    b_padded = n_tiles * tb
    if b_padded != B:
        # Negligible at small B; for large batches guarantee B % tile_b == 0
        # upstream instead of paying this extra HBM read+write of x.
        x = jnp.pad(x, ((0, b_padded - B), (0, 0)))

    out = pl.pallas_call(
        policy_kernel,
        out_shape=jax.ShapeDtypeStruct((b_padded, a_pad), jnp.float32),
        grid=(n_tiles,),
        in_specs=[
            pl.BlockSpec((tb, obs), lambda i: (i, 0)),        # x: streamed per batch tile
            pl.BlockSpec((obs, hidden), lambda i: (0, 0)),    # W1: resident in VMEM
            pl.BlockSpec((1, hidden), lambda i: (0, 0)),      # b1: resident
            pl.BlockSpec((hidden, a_pad), lambda i: (0, 0)),  # W2 (padded): resident
            pl.BlockSpec((1, a_pad), lambda i: (0, 0)),       # b2 (padded): resident
        ],
        out_specs=pl.BlockSpec((tb, a_pad), lambda i: (i, 0)),
        compiler_params=pltpu.CompilerParams(
            dimension_semantics=("parallel",)),  # v7x: 2 TCs split the batch tiles
    )(x, w1b, b1b, w2b, b2f)

    return out[:B, :actions]


if __name__ == "__main__":
    # Module shapes: Linear(observation_space, 128) -> tanh -> Linear(128, action_space)
    BATCH = 4
    OBS = 32          # observation_space
    HIDDEN = 128      # fixed by the module
    ACTIONS = 6       # action_space

    key = jax.random.PRNGKey(0)
    kx, k1, k2, k3, k4 = jax.random.split(key, 5)

    # Deterministic synthetic parameters (stored as (in, out) so the kernel does x @ W).
    x = jax.random.normal(kx, (BATCH, OBS), dtype=jnp.float32)
    w1 = jax.random.normal(k1, (OBS, HIDDEN), dtype=jnp.float32) * 0.1
    b1 = jax.random.normal(k2, (1, HIDDEN), dtype=jnp.float32) * 0.1
    w2 = jax.random.normal(k3, (HIDDEN, ACTIONS), dtype=jnp.float32) * 0.1
    b2 = jax.random.normal(k4, (1, ACTIONS), dtype=jnp.float32) * 0.1

    probs = policy_network_forward(x, w1, b1, w2, b2)
    probs = jax.block_until_ready(probs)

    # Sanity checks against a pure-JAX f32 reference. Row sums are exact (plain
    # divide); elementwise tolerance loosened for bf16 MXU operands / bf16 tanh.
    ref = jax.nn.softmax(jnp.tanh(x @ w1 + b1) @ w2 + b2, axis=1)
    assert probs.shape == (BATCH, ACTIONS)
    assert jnp.allclose(jnp.sum(probs, axis=1), 1.0, atol=1e-3)
    assert jnp.allclose(probs, ref, atol=2e-2)

    print("KERNEL_OK")
</pallas_src>

<mosaic_0001>
module attributes {stable_mosaic.version = 11 : i64} {
  func.func @policy_kernel(%arg0: i32, %arg1: memref<8x32xf32, #tpu.memory_space<vmem>>, %arg2: memref<32x128xbf16, #tpu.memory_space<vmem>>, %arg3: memref<1x128xbf16, #tpu.memory_space<vmem>>, %arg4: memref<128x128xbf16, #tpu.memory_space<vmem>>, %arg5: memref<1x128xf32, #tpu.memory_space<vmem>>, %arg6: memref<8x128xf32, #tpu.memory_space<vmem>>) attributes {dimension_semantics = [#tpu.dimension_semantics<parallel>], iteration_bounds = array<i64: 1>, scalar_prefetch = 0 : i64, scratch_operands = 0 : i64, tpu.core_type = #tpu.core_type<tc>, window_params = [{transform_indices = @transform_0, window_bounds = array<i64: 8, 32>}, {pipeline_mode = #tpu.pipeline_mode<synchronous>, transform_indices = @transform_1, window_bounds = array<i64: 32, 128>}, {pipeline_mode = #tpu.pipeline_mode<synchronous>, transform_indices = @transform_2, window_bounds = array<i64: 1, 128>}, {pipeline_mode = #tpu.pipeline_mode<synchronous>, transform_indices = @transform_3, window_bounds = array<i64: 128, 128>}, {pipeline_mode = #tpu.pipeline_mode<synchronous>, transform_indices = @transform_4, window_bounds = array<i64: 1, 128>}, {transform_indices = @transform_5, window_bounds = array<i64: 8, 128>}]} {
    %c0 = arith.constant 0 : index
    %c0_0 = arith.constant 0 : index
    %0 = vector.load %arg1[%c0, %c0_0] : memref<8x32xf32, #tpu.memory_space<vmem>>, vector<8x32xf32>
    %1 = arith.truncf %0 : vector<8x32xf32> to vector<8x32xbf16>
    %c0_1 = arith.constant 0 : index
    %c0_2 = arith.constant 0 : index
    %2 = vector.load %arg2[%c0_1, %c0_2] : memref<32x128xbf16, #tpu.memory_space<vmem>>, vector<32x128xbf16>
    %cst = arith.constant dense<0.000000e+00> : vector<8x128xf32>
    %3 = tpu.matmul %1, %2, %cst {dimension_numbers = #tpu.dot_dimension_numbers<[1], [0], [0], [1], [0, 0, 1, 1], [], []>} : vector<8x32xbf16>, vector<32x128xbf16>, vector<8x128xf32> -> vector<8x128xf32>
    %4 = arith.truncf %3 : vector<8x128xf32> to vector<8x128xbf16>
    %c0_3 = arith.constant 0 : index
    %c0_4 = arith.constant 0 : index
    %5 = vector.load %arg3[%c0_3, %c0_4] : memref<1x128xbf16, #tpu.memory_space<vmem>>, vector<1x128xbf16>
    %6 = vector.broadcast %5 : vector<1x128xbf16> to vector<8x128xbf16>
    %7 = arith.addf %4, %6 : vector<8x128xbf16>
    %8 = math.tanh %7 : vector<8x128xbf16>
    %c0_5 = arith.constant 0 : index
    %c0_6 = arith.constant 0 : index
    %9 = vector.load %arg4[%c0_5, %c0_6] : memref<128x128xbf16, #tpu.memory_space<vmem>>, vector<128x128xbf16>
    %cst_7 = arith.constant dense<0.000000e+00> : vector<8x128xf32>
    %10 = tpu.matmul %8, %9, %cst_7 {dimension_numbers = #tpu.dot_dimension_numbers<[1], [0], [0], [1], [0, 0, 1, 1], [], []>} : vector<8x128xbf16>, vector<128x128xbf16>, vector<8x128xf32> -> vector<8x128xf32>
    %c0_8 = arith.constant 0 : index
    %c0_9 = arith.constant 0 : index
    %11 = vector.load %arg5[%c0_8, %c0_9] : memref<1x128xf32, #tpu.memory_space<vmem>>, vector<1x128xf32>
    %12 = vector.broadcast %11 : vector<1x128xf32> to vector<8x128xf32>
    %13 = arith.addf %10, %12 : vector<8x128xf32>
    %cst_10 = arith.constant dense<0xFF800000> : vector<8xf32>
    %14 = vector.multi_reduction <maximumf>, %13, %cst_10 [1] : vector<8x128xf32> to vector<8xf32>
    %15 = vector.shape_cast %14 : vector<8xf32> to vector<8x1xf32>
    %16 = vector.broadcast %15 : vector<8x1xf32> to vector<8x128xf32>
    %17 = arith.subf %13, %16 : vector<8x128xf32>
    %18 = math.exp %17 : vector<8x128xf32>
    %cst_11 = arith.constant dense<0.000000e+00> : vector<8xf32>
    %19 = vector.multi_reduction <add>, %18, %cst_11 [1] : vector<8x128xf32> to vector<8xf32>
    %20 = vector.shape_cast %19 : vector<8xf32> to vector<8x1xf32>
    %21 = vector.broadcast %20 : vector<8x1xf32> to vector<8x128xf32>
    %22 = arith.divf %18, %21 : vector<8x128xf32>
    %c0_12 = arith.constant 0 : index
    %c0_13 = arith.constant 0 : index
    %23 = vector.load %arg6[%c0_12, %c0_13] : memref<8x128xf32, #tpu.memory_space<vmem>>, vector<8x128xf32>
    tpu.vector_store %arg6[%c0_12, %c0_13], %22 {strides = array<i32>} : memref<8x128xf32, #tpu.memory_space<vmem>>, vector<8x128xf32>,
    return
  }
  func.func @transform_0(%arg0: i32) -> (i32, i32) {
    %c0_i32 = arith.constant 0 : i32
    %c0_i32_0 = arith.constant 0 : i32
    return %arg0, %c0_i32 : i32, i32
  }
  func.func @transform_1(%arg0: i32) -> (i32, i32) {
    %c0_i32 = arith.constant 0 : i32
    %c0_i32_0 = arith.constant 0 : i32
    %c0_i32_1 = arith.constant 0 : i32
    return %c0_i32, %c0_i32_0 : i32, i32
  }
  func.func @transform_2(%arg0: i32) -> (i32, i32) {
    %c0_i32 = arith.constant 0 : i32
    %c0_i32_0 = arith.constant 0 : i32
    %c0_i32_1 = arith.constant 0 : i32
    return %c0_i32, %c0_i32_0 : i32, i32
  }
  func.func @transform_3(%arg0: i32) -> (i32, i32) {
    %c0_i32 = arith.constant 0 : i32
    %c0_i32_0 = arith.constant 0 : i32
    %c0_i32_1 = arith.constant 0 : i32
    return %c0_i32, %c0_i32_0 : i32, i32
  }
  func.func @transform_4(%arg0: i32) -> (i32, i32) {
    %c0_i32 = arith.constant 0 : i32
    %c0_i32_0 = arith.constant 0 : i32
    %c0_i32_1 = arith.constant 0 : i32
    return %c0_i32, %c0_i32_0 : i32, i32
  }
  func.func @transform_5(%arg0: i32) -> (i32, i32) {
    %c0_i32 = arith.constant 0 : i32
    %c0_i32_0 = arith.constant 0 : i32
    return %arg0, %c0_i32 : i32, i32
  }
}

</mosaic_0001>

<llo_original>
// kernel: tpu_custom_call.1
$region0: #{tpu_custom_call.1}
  #allocation0 [shape = 'u32[]', space=smem, size = 0x4, offset = 0x4, fixed_abs, tag = 'smem constant byte address 0x4 - core index']
  #allocation1 [shape = 'u32[144,128]{1,0:T(1,128)}', space=vmem, size = 0x12000, scoped, tag = 'internal scratch']
  %s0 = inlined_call_operand.hbm [shape: f32[8,32], index: 0, kind: input, shape index: {}]
  %s1 = inlined_call_operand.hbm [shape: bf16[32,128], index: 1, kind: input, shape index: {}]
  %s2 = inlined_call_operand.vmem [shape: bf16[1,128], index: 2, kind: input, shape index: {}]
  %s3 = inlined_call_operand.hbm [shape: bf16[128,128], index: 3, kind: input, shape index: {}]
  %s4 = inlined_call_operand.vmem [shape: f32[1,128], index: 4, kind: input, shape index: {}]
  %s5 = inlined_call_operand.hbm [shape: f32[8,128], index: 5, kind: output, shape index: {}]
  %s6 = sld [smem:[#allocation0]]
  $region42: #{tpu_custom_call.1} parent=0
    _
  %s8 = ssub.s32 1, %s6
  %s9 = scalar_select 0, %s8, %s6
  $region1: #{tpu_custom_call.1} parent=0
    #allocation2 [shape = 'u8[4096]{0}', space=vmem, size = 0x1000, scoped, tag = 'input window, operand 0, single buffered']
    #allocation3 [shape = 's32[1]{0}', space=sflag, size = 0x4, scoped, tag = 'scoped memory for tpu_custom_call.1']
    #allocation4 [shape = 's32[1]{0}', space=sflag, size = 0x4, scoped, tag = 'scoped memory for tpu_custom_call.1']
    #allocation5 [shape = 'u8[8192]{0}', space=vmem, size = 0x2000, scoped, tag = 'input window, operand 1, single buffered']
    #allocation6 [shape = 's32[1]{0}', space=sflag, size = 0x4, scoped, tag = 'scoped memory for tpu_custom_call.1']
    #allocation7 [shape = 'u8[32768]{0}', space=vmem, size = 0x8000, scoped, tag = 'input window, operand 3, single buffered']
    #allocation8 [shape = 'u8[4096]{0}', space=vmem, size = 0x1000, scoped, tag = 'output window, operand 0, single buffered']
    %10 = vsyncpa [#allocation3], 0
    %11 = vsyncpa [#allocation6], 0
    %12 = vsyncpa [#allocation4], 0
    // Predicated region
    $region2: #{tpu_custom_call.1} parent=1 // pred_check
      _
    $region3: #{tpu_custom_call.1} parent=1 // pred_check_branch
      %14 = sbr.rel (0) target = $region5
    $region4: #{tpu_custom_call.1} parent=1 // pred_region
      %s16 = ssub.s32 128, 128
      %17 = vsyncadd [#allocation3], %s16
      %s19 = sshll.u32 [#allocation2], 4
      %s20 = int_to_ptr.vmem [resolvable:$true] %s19
      %22 = dma.hbm_to_vmem [thread:$0]  %s0, 128, %s20, [#allocation3]
    $region5: #{tpu_custom_call.1} parent=1 // pred_fallthru
      _
    // Predicated region
    $region6: #{tpu_custom_call.1} parent=1 // pred_check
      _
    $region7: #{tpu_custom_call.1} parent=1 // pred_check_branch
      %24 = sbr.rel (0) target = $region9
    $region8: #{tpu_custom_call.1} parent=1 // pred_region
      %s26 = ssub.s32 256, 256
      %27 = vsyncadd [#allocation6], %s26
      %s28 = sshll.u32 [#allocation5], 4
      %s29 = int_to_ptr.vmem [resolvable:$true] %s28
      %34 = dma.hbm_to_vmem [thread:$0]  %s1, 256, %s29, [#allocation6], 64, 64, 4
    $region9: #{tpu_custom_call.1} parent=1 // pred_fallthru
      _
    // Predicated region
    $region10: #{tpu_custom_call.1} parent=1 // pred_check
      _
    $region11: #{tpu_custom_call.1} parent=1 // pred_check_branch
      %36 = sbr.rel (0) target = $region13
    $region12: #{tpu_custom_call.1} parent=1 // pred_region
      _
    $region13: #{tpu_custom_call.1} parent=1 // pred_fallthru
      _
    // Predicated region
    $region14: #{tpu_custom_call.1} parent=1 // pred_check
      _
    $region15: #{tpu_custom_call.1} parent=1 // pred_check_branch
      %38 = sbr.rel (0) target = $region17
    $region16: #{tpu_custom_call.1} parent=1 // pred_region
      %s40 = ssub.s32 1024, 1024
      %41 = vsyncadd [#allocation6], %s40
      %s42 = sshll.u32 [#allocation7], 4
      %s43 = int_to_ptr.vmem [resolvable:$true] %s42
      %48 = dma.hbm_to_vmem [thread:$0]  %s3, 1024, %s43, [#allocation6], 64, 64, 4
    $region17: #{tpu_custom_call.1} parent=1 // pred_fallthru
      _
    // Predicated region
    $region18: #{tpu_custom_call.1} parent=1 // pred_check
      _
    $region19: #{tpu_custom_call.1} parent=1 // pred_check_branch
      %50 = sbr.rel (0) target = $region21
    $region20: #{tpu_custom_call.1} parent=1 // pred_region
      _
    $region21: #{tpu_custom_call.1} parent=1 // pred_fallthru
      _
    // Predicated region
    $region22: #{tpu_custom_call.1} parent=1 // pred_check
      _
    $region23: #{tpu_custom_call.1} parent=1 // pred_check_branch
      %52 = sbr.rel (0) target = $region25
    $region24: #{tpu_custom_call.1} parent=1 // pred_region
      %53 = dma.done [#allocation3], 128
    $region25: #{tpu_custom_call.1} parent=1 // pred_fallthru
      _
    // Predicated region
    $region26: #{tpu_custom_call.1} parent=1 // pred_check
      _
    $region27: #{tpu_custom_call.1} parent=1 // pred_check_branch
      %55 = sbr.rel (0) target = $region29
    $region28: #{tpu_custom_call.1} parent=1 // pred_region
      %56 = dma.done [#allocation6], 256
    $region29: #{tpu_custom_call.1} parent=1 // pred_fallthru
      _
    // Predicated region
    $region30: #{tpu_custom_call.1} parent=1 // pred_check
      _
    $region31: #{tpu_custom_call.1} parent=1 // pred_check_branch
      %58 = sbr.rel (0) target = $region33
    $region32: #{tpu_custom_call.1} parent=1 // pred_region
      %59 = dma.done [#allocation6], 1024
    $region33: #{tpu_custom_call.1} parent=1 // pred_fallthru
      _
    %v61 = vld [vmem:[#allocation2] sm:$0xff]
    %v62 = vpack.c.bf16 %v61, %v61
    %v63 = vld [vmem:[#allocation5] sm:$0xf]
    %v64 = vld [vmem:[#allocation5 + $0x4] sm:$0xf]
    %v65 = vld [vmem:[#allocation5 + $0x8] sm:$0xf]
    %v66 = vld [vmem:[#allocation5 + $0xc] sm:$0xf]
    %v71 = vunpack.c.l.b16 %v63
    %v72 = vunpack.c.l.b16 %v64
    %v73 = vunpack.c.l.b16 %v65
    %v74 = vunpack.c.l.b16 %v66
    %v75 = vpack.c.b16 %v72, %v71
    %v76 = vpack.c.b16 %v74, %v73
    %vm79 = vcmask 261120
    %v81 = vsel %vm79, %v62, 0
    %83 = vmatprep.subr.bf16.mxu0 0
    %84 = vmatpush1.bf16.msra.mxu0 %v75
    %85 = vmatprep.subr.bf16.mxu0 0
    %86 = vmatpush1.bf16.msra.mxu0 %v76
    %87 = vmatprep.subr.bf16.mxu0 0
    %88 = vmatpush1.bf16.msra.mxu0 0
    %89 = vmatprep.subr.bf16.mxu0 0
    %90 = vmatpush1.bf16.msra.mxu0 0
    %91 = vmatprep.subr.bf16.mxu0 0
    %92 = vmatpush1.bf16.msra.mxu0 0
    %93 = vmatprep.subr.bf16.mxu0 0
    %94 = vmatpush1.bf16.msra.mxu0 0
    %95 = vmatprep.subr.bf16.mxu0 0
    %96 = vmatpush1.bf16.msra.mxu0 0
    %97 = vmatprep.subr.bf16.mxu0 0
    %98 = vmatpush1.bf16.msra.mxu0 0
    %99 = vmatprep.subr.bf16.mxu0 0
    %100 = vmatpush1.bf16.msra.mxu0 0
    %101 = vmatprep.subr.bf16.mxu0 0
    %102 = vmatpush1.bf16.msra.mxu0 0
    %103 = vmatprep.subr.bf16.mxu0 0
    %104 = vmatpush1.bf16.msra.mxu0 0
    %105 = vmatprep.subr.bf16.mxu0 0
    %106 = vmatpush1.bf16.msra.mxu0 0
    %107 = vmatprep.subr.bf16.mxu0 0
    %108 = vmatpush1.bf16.msra.mxu0 0
    %109 = vmatprep.subr.bf16.mxu0 0
    %110 = vmatpush1.bf16.msra.mxu0 0
    %111 = vmatprep.subr.bf16.mxu0 0
    %112 = vmatpush1.bf16.msra.mxu0 0
    %113 = vmatprep.subr.bf16.mxu0 0
    %114 = vmatpush1.bf16.msra.mxu0 0
    %115 = vmatprep.mubr.bf16.mxu0 0
    %116 = vmatmul.mubr.bf16.gmra.mrb[0].mxu0 %v81
    %v117 = vpop.f32.mrb[0].mxu0
    %v118 = vadd.f32 0.0, %v117
    %v119 = vpop.f32.mrb[0].mxu0
    %v120 = vpop.f32.mrb[0].mxu0
    %v121 = vpop.f32.mrb[0].mxu0
    %122 = vdwg.mxu0
    %v123 = vpack.c.bf16 %v118, %v118
    %v124 = vld [vmem:[%s2] sm:$0x1]
    %v126 = vpack.i.b16 %v124, %v124
    %v128 = vlaneseq
    %v129 = vshrl.u32 %v128, 7
    %v130 = vsub.s32 0, %v129
    %v131 = vrot.slane %v126, %v130
    %v132 = vadd.bf16 %v123, %v131
    %v133 = vtanh.bf16.pop %v132
    %v134 = vld [vmem:[#allocation7] sm:$0xf]
    %v135 = vld [vmem:[#allocation7 + $0x4] sm:$0xf]
    %v136 = vld [vmem:[#allocation7 + $0x8] sm:$0xf]
    %v137 = vld [vmem:[#allocation7 + $0xc] sm:$0xf]
    %v138 = vld [vmem:[#allocation7 + $0x10] sm:$0xf]
    %v139 = vld [vmem:[#allocation7 + $0x14] sm:$0xf]
    %v140 = vld [vmem:[#allocation7 + $0x18] sm:$0xf]
    %v141 = vld [vmem:[#allocation7 + $0x1c] sm:$0xf]
    %v142 = vld [vmem:[#allocation7 + $0x20] sm:$0xf]
    %v143 = vld [vmem:[#allocation7 + $0x24] sm:$0xf]
    %v144 = vld [vmem:[#allocation7 + $0x28] sm:$0xf]
    %v145 = vld [vmem:[#allocation7 + $0x2c] sm:$0xf]
    %v146 = vld [vmem:[#allocation7 + $0x30] sm:$0xf]
    %v147 = vld [vmem:[#allocation7 + $0x34] sm:$0xf]
    %v148 = vld [vmem:[#allocation7 + $0x38] sm:$0xf]
    %v149 = vld [vmem:[#allocation7 + $0x3c] sm:$0xf]
    %v150 = vld [vmem:[%s4] sm:$0x1]
    %v152 = vlaneseq
    %v153 = vshrl.u32 %v152, 7
    %v154 = vsub.s32 0, %v153
    %v155 = vrot.slane %v150, %v154
    %v173 = vunpack.c.l.b16 %v134
    %v174 = vunpack.c.l.b16 %v135
    %v175 = vunpack.c.l.b16 %v136
    %v176 = vunpack.c.l.b16 %v137
    %v177 = vunpack.c.l.b16 %v138
    %v178 = vunpack.c.l.b16 %v139
    %v179 = vunpack.c.l.b16 %v140
    %v180 = vunpack.c.l.b16 %v141
    %v181 = vunpack.c.l.b16 %v142
    %v182 = vunpack.c.l.b16 %v143
    %v183 = vunpack.c.l.b16 %v144
    %v184 = vunpack.c.l.b16 %v145
    %v185 = vunpack.c.l.b16 %v146
    %v186 = vunpack.c.l.b16 %v147
    %v187 = vunpack.c.l.b16 %v148
    %v188 = vunpack.c.l.b16 %v149
    %v189 = vpack.c.b16 %v174, %v173
    %v190 = vpack.c.b16 %v176, %v175
    %v191 = vpack.c.b16 %v178, %v177
    %v192 = vpack.c.b16 %v180, %v179
    %v193 = vpack.c.b16 %v182, %v181
    %v194 = vpack.c.b16 %v184, %v183
    %v195 = vpack.c.b16 %v186, %v185
    %v196 = vpack.c.b16 %v188, %v187
    %205 = vmatprep.subr.bf16.mxu0 0
    %206 = vmatpush1.bf16.msra.mxu0 %v189
    %207 = vmatprep.subr.bf16.mxu0 0
    %208 = vmatpush1.bf16.msra.mxu0 %v190
    %209 = vmatprep.subr.bf16.mxu0 0
    %210 = vmatpush1.bf16.msra.mxu0 %v191
    %211 = vmatprep.subr.bf16.mxu0 0
    %212 = vmatpush1.bf16.msra.mxu0 %v192
    %213 = vmatprep.subr.bf16.mxu0 0
    %214 = vmatpush1.bf16.msra.mxu0 %v193
    %215 = vmatprep.subr.bf16.mxu0 0
    %216 = vmatpush1.bf16.msra.mxu0 %v194
    %217 = vmatprep.subr.bf16.mxu0 0
    %218 = vmatpush1.bf16.msra.mxu0 %v195
    %219 = vmatprep.subr.bf16.mxu0 0
    %220 = vmatpush1.bf16.msra.mxu0 %v196
    %221 = vmatprep.subr.bf16.mxu0 0
    %222 = vmatpush1.bf16.msra.mxu0 0
    %223 = vmatprep.subr.bf16.mxu0 0
    %224 = vmatpush1.bf16.msra.mxu0 0
    %225 = vmatprep.subr.bf16.mxu0 0
    %226 = vmatpush1.bf16.msra.mxu0 0
    %227 = vmatprep.subr.bf16.mxu0 0
    %228 = vmatpush1.bf16.msra.mxu0 0
    %229 = vmatprep.subr.bf16.mxu0 0
    %230 = vmatpush1.bf16.msra.mxu0 0
    %231 = vmatprep.subr.bf16.mxu0 0
    %232 = vmatpush1.bf16.msra.mxu0 0
    %233 = vmatprep.subr.bf16.mxu0 0
    %234 = vmatpush1.bf16.msra.mxu0 0
    %235 = vmatprep.subr.bf16.mxu0 0
    %236 = vmatpush1.bf16.msra.mxu0 0
    %237 = vmatprep.mubr.bf16.mxu0 0
    %238 = vmatmul.mubr.bf16.gmra.mrb[0].mxu0 %v133
    %v239 = vpop.f32.mrb[0].mxu0
    %v240 = vadd.f32 %v155, %v239
    %v241 = vpop.f32.mrb[0].mxu0
    %v242 = vpop.f32.mrb[0].mxu0
    %v243 = vpop.f32.mrb[0].mxu0
    %244 = vdwg.mxu0
    %245 = vmax.xlane.f32.xlu0 %v240
    %v246 = vpop.xlane.xlu0 %245
    %v247 = vsub.f32 %v240, %v246
    %v248 = vmul.f32 %v247, 1.442695
    %v249 = vpow.pop %v248
    %250 = vadd.xlane.f32.xlu0 %v249
    %v251 = vpop.xlane.xlu0 %250
    %v252 = vrcp.pop %v251
    %v253 = vmul.f32 %v249, %v252
    %254 = vst [vmem:[#allocation8] sm:$0xff] %v253
    // Predicated region
    $region34: #{tpu_custom_call.1} parent=1 // pred_check
      _
    $region35: #{tpu_custom_call.1} parent=1 // pred_check_branch
      %256 = sbr.rel (0) target = $region37
    $region36: #{tpu_custom_call.1} parent=1 // pred_region
      %s258 = ssub.s32 128, 128
      %259 = vsyncadd [#allocation4], %s258
      %s261 = sshll.u32 [#allocation8], 4
      %s262 = int_to_ptr.vmem [resolvable:$true] %s261
      %264 = dma.vmem_to_hbm [thread:$0]  %s262, 128, %s5, [#allocation4]
    $region37: #{tpu_custom_call.1} parent=1 // pred_fallthru
      _
    // Predicated region
    $region38: #{tpu_custom_call.1} parent=1 // pred_check
      _
    $region39: #{tpu_custom_call.1} parent=1 // pred_check_branch
      %266 = sbr.rel (0) target = $region41
    $region40: #{tpu_custom_call.1} parent=1 // pred_region
      %267 = dma.done [#allocation4], 128
    $region41: #{tpu_custom_call.1} parent=1 // pred_fallthru
      _
    %268 = vsyncpa [#allocation3], 1
    %269 = vsyncpa [#allocation6], 1
    %270 = vsyncpa [#allocation4], 1

</llo_original>
